<compile_context>
chip_gen: v7x
topology: tpu7x:2x2x1
jax: 0.10.0
libtpu: 0.0.40
codegen_flags: <defaults>
</compile_context>

<pallas_src>
import functools

import jax
import jax.numpy as jnp
from jax.experimental import pallas as pl
from jax.experimental.pallas import tpu as pltpu

EPS = 1e-6
_MIB = 1024 * 1024


def _sublayer_connection_kernel(x_ref, w_ref, p_ref, o_ref, *,
                                encoder_type, hid_dim, d_pad):
    x = x_ref[...]                       # (tile_rows, d_pad), native dtype
    w = w_ref[...]                       # (d_pad, d_pad), native dtype
    params = p_ref[...]                  # (3, d_pad) f32: [bias, gamma, beta]
    b = params[0:1, :]
    g = params[1:2, :]
    be = params[2:3, :]

    # Lane mask for the variance when D was zero-padded to a multiple of 128.
    # Every LayerNorm input has exactly-zero padded lanes, so the mean only
    # needs the true-D divisor; the squared deviation must be masked.
    if d_pad != hid_dim:
        lane_ok = jax.lax.broadcasted_iota(jnp.int32, (1, d_pad), 1) < hid_dim
    else:
        lane_ok = None

    def layernorm(v):
        # v: (tile_rows, d_pad) f32. torch.std semantics: unbiased, eps on std.
        mean = jnp.sum(v, axis=-1, keepdims=True) * (1.0 / hid_dim)
        diff = v - mean
        d2 = diff * diff
        if lane_ok is not None:
            d2 = jnp.where(lane_ok, d2, 0.0)
        var = jnp.sum(d2, axis=-1, keepdims=True) * (1.0 / (hid_dim - 1))
        inv = 1.0 / (jnp.sqrt(var) + EPS)          # one divide per row
        return g * diff * inv + be                 # broadcast multiply

    def sublayer(v):
        # Linear(D, D) on the MXU; f32 accumulation, operands stay narrow.
        return jnp.dot(v, w, preferred_element_type=jnp.float32) + b

    x32 = x.astype(jnp.float32)

    if encoder_type == "AllRank":
        # x + dropout(sublayer(norm(x)))   (dropout == identity, eval mode)
        out = x32 + sublayer(layernorm(x32).astype(x.dtype))
    elif encoder_type == "DASALC":
        out = layernorm(sublayer(x))
    elif encoder_type == "AttnDIN":
        out = layernorm(x32 + sublayer(x))
    else:
        raise NotImplementedError(encoder_type)

    o_ref[...] = out.astype(o_ref.dtype)


def _vmem_budget_bytes():
    """Per-generation VMEM budget: physical capacity minus pipelining headroom."""
    try:
        cap = int(pltpu.get_tpu_info().vmem_capacity_bytes)
    except Exception:
        cap = 64 * _MIB                            # conservative default (v7x)
    return max(cap - 16 * _MIB, 8 * _MIB)          # ~48 MiB v7x, ~112 MiB v5e/v6e


def _derive_tile_rows(rows, d_pad, x_itemsize, w_itemsize, requested, budget):
    """Row-tile height from dtype packing, VMEM budget and a >=2-step grid."""
    pack = max(8, 32 // x_itemsize)                # 8 f32 / 16 bf16 / 32 int8
    # Per-row VMEM: in + out tiles double-buffered, plus f32 intermediates.
    per_row = d_pad * (4 * x_itemsize + 3 * 4)
    fixed = 2 * d_pad * d_pad * w_itemsize + 2 * 3 * d_pad * 4
    avail = max(budget - fixed, pack * per_row)
    t = max(pack, (min(int(requested), avail // per_row) // pack) * pack)
    # Never exceed the (sublane-padded) problem size.
    t = min(t, pl.cdiv(rows, pack) * pack)
    # Keep >= 2 grid steps when possible so both v7x TensorCores get work.
    if rows > pack:
        t = min(t, pl.cdiv(pl.cdiv(rows, 2), pack) * pack)
    return max(t, pack)


def _invariant_spec(shape):
    """Grid-invariant operand: request a single VMEM buffer (no double-buffer)."""
    try:
        return pl.BlockSpec(shape, lambda i: (0, 0), pipeline_mode=pl.Buffered(1))
    except (TypeError, AttributeError):
        return pl.BlockSpec(shape, lambda i: (0, 0))


def sublayer_connection(x, w, b, gamma, beta, *, encoder_type, tile_rows=1024):
    """x: (B, L, D); w: (D, D); b, gamma, beta: (D,). Returns (B, L, D)."""
    B, L, D = x.shape
    rows = B * L
    x_itemsize = jnp.dtype(x.dtype).itemsize
    w_itemsize = jnp.dtype(w.dtype).itemsize

    # Lane-dense layout: pad the feature dim to a multiple of 128 so the output
    # stores are unmasked and the MXU K/N dims stay aligned.
    d_pad = pl.cdiv(D, 128) * 128
    x2 = x.reshape(rows, D)
    if d_pad != D:
        p = d_pad - D
        x2 = jnp.pad(x2, ((0, 0), (0, p)))
        w2 = jnp.pad(w, ((0, p), (0, p)))
        b2, g2, be2 = (jnp.pad(v, (0, p)) for v in (b, gamma, beta))
    else:
        w2, b2, g2, be2 = w, b, gamma, beta

    # Fuse the three (D,) parameter vectors into one (3, D) f32 array (one DMA).
    params = jnp.stack([b2.astype(jnp.float32), g2.astype(jnp.float32),
                        be2.astype(jnp.float32)], axis=0)

    budget = _vmem_budget_bytes()
    tile_rows = _derive_tile_rows(rows, d_pad, x_itemsize, w_itemsize,
                                  tile_rows, budget)
    # No row padding: Pallas masks the ragged last tile on writeback (every row
    # is independent; no cross-row reduction inside the kernel).
    grid = (pl.cdiv(rows, tile_rows),)

    vmem_est = (4 * tile_rows * d_pad * x_itemsize       # x in + out, 2 bufs each
                + 2 * d_pad * d_pad * w_itemsize         # W (<= 2 buffers)
                + 2 * 3 * d_pad * 4                      # params
                + 3 * tile_rows * d_pad * 4)             # f32 intermediates
    vmem_limit = int(min(max(vmem_est * 3 // 2, 32 * _MIB), budget))

    cost = pl.CostEstimate(
        flops=2 * rows * d_pad * d_pad + 8 * rows * d_pad,
        transcendentals=0,
        bytes_accessed=(2 * rows * d_pad * x_itemsize
                        + d_pad * d_pad * w_itemsize
                        + 3 * d_pad * 4),
    )

    kernel = functools.partial(_sublayer_connection_kernel,
                               encoder_type=encoder_type,
                               hid_dim=D, d_pad=d_pad)

    def _call(single_buffer_invariants):
        if single_buffer_invariants:
            w_spec = _invariant_spec((d_pad, d_pad))
            p_spec = _invariant_spec((3, d_pad))
        else:
            w_spec = pl.BlockSpec((d_pad, d_pad), lambda i: (0, 0))
            p_spec = pl.BlockSpec((3, d_pad), lambda i: (0, 0))
        return pl.pallas_call(
            kernel,
            out_shape=jax.ShapeDtypeStruct((rows, d_pad), x.dtype),
            grid_spec=pltpu.PrefetchScalarGridSpec(
                num_scalar_prefetch=0,
                grid=grid,
                in_specs=[
                    pl.BlockSpec((tile_rows, d_pad), lambda i: (i, 0)),  # x rows
                    w_spec,                                              # W
                    p_spec,                                              # params
                ],
                out_specs=pl.BlockSpec((tile_rows, d_pad), lambda i: (i, 0)),
            ),
            compiler_params=pltpu.CompilerParams(
                dimension_semantics=("parallel",),
                vmem_limit_bytes=vmem_limit),
            cost_estimate=cost,
        )(x2, w2, params)

    try:
        out = _call(True)
    except Exception:
        # Graceful degrade if this JAX build rejects Buffered(1) on invariants.
        out = _call(False)

    if d_pad != D:
        out = out[:, :D]
    return out.reshape(B, L, D)


def _reference(x, w, b, gamma, beta, encoder_type):
    x = x.astype(jnp.float32)
    w = w.astype(jnp.float32)
    b = b.astype(jnp.float32)
    gamma = gamma.astype(jnp.float32)
    beta = beta.astype(jnp.float32)

    def norm(v):
        mean = jnp.mean(v, -1, keepdims=True)
        diff = v - mean
        var = jnp.sum(diff * diff, -1, keepdims=True) / (v.shape[-1] - 1)
        return gamma * diff / (jnp.sqrt(var) + EPS) + beta

    def sub(v):
        return v @ w + b

    if encoder_type == "AllRank":
        return x + sub(norm(x))
    if encoder_type == "DASALC":
        return norm(sub(x))
    if encoder_type == "AttnDIN":
        return norm(x + sub(x))
    raise NotImplementedError(encoder_type)


if __name__ == "__main__":
    # (dtype, batch, ranking_size, hid_dim, tolerance)
    configs = [
        (jnp.float32, 2, 8, 128, 1e-4),     # aligned D, f32
        (jnp.float32, 3, 50, 100, 1e-4),    # D % 128 != 0 -> lane-padded path
        (jnp.bfloat16, 2, 8, 128, 1e-1),    # bf16 I/O opt-in (f32 LN statistics)
    ]
    ok = True
    for dtype, B, L, D, tol in configs:
        key = jax.random.PRNGKey(0)
        kx, kw, kb = jax.random.split(key, 3)
        x = jax.random.normal(kx, (B, L, D), dtype=jnp.float32)
        # Deterministic synthetic parameters (sublayer = Linear(D, D)).
        w = jax.random.normal(kw, (D, D), dtype=jnp.float32) * 0.05   # weight
        b = jax.random.normal(kb, (D,), dtype=jnp.float32) * 0.01     # bias
        gamma = jnp.ones((D,), dtype=jnp.float32)                     # LN a_2
        beta = jnp.zeros((D,), dtype=jnp.float32)                     # LN b_2
        x, w, b = x.astype(dtype), w.astype(dtype), b.astype(dtype)

        for et in ("AllRank", "DASALC", "AttnDIN"):
            out = sublayer_connection(x, w, b, gamma, beta, encoder_type=et)
            out = jax.block_until_ready(out)
            ref = _reference(x, w, b, gamma, beta, et)
            err = float(jnp.max(jnp.abs(out.astype(jnp.float32) - ref)))
            if not err <= tol:
                ok = False
                print(f"mismatch dtype={jnp.dtype(dtype).name} D={D} "
                      f"encoder={et}: max abs err = {err}")

    if ok:
        print("KERNEL_OK")
</pallas_src>

<mosaic_0001>
module attributes {stable_mosaic.version = 11 : i64} {
  func.func @_sublayer_connection_kernel(%arg0: i32, %arg1: memref<8x128xf32, #tpu.memory_space<vmem>>, %arg2: memref<128x128xf32, #tpu.memory_space<vmem>>, %arg3: memref<3x128xf32, #tpu.memory_space<vmem>>, %arg4: memref<8x128xf32, #tpu.memory_space<vmem>>) attributes {dimension_semantics = [#tpu.dimension_semantics<parallel>], iteration_bounds = array<i64: 2>, scalar_prefetch = 0 : i64, scratch_operands = 0 : i64, tpu.core_type = #tpu.core_type<tc>, window_params = [{transform_indices = @transform_0, window_bounds = array<i64: 8, 128>}, {pipeline_mode = #tpu.pipeline_mode<synchronous>, transform_indices = @transform_1, window_bounds = array<i64: 128, 128>}, {pipeline_mode = #tpu.pipeline_mode<synchronous>, transform_indices = @transform_2, window_bounds = array<i64: 3, 128>}, {transform_indices = @transform_3, window_bounds = array<i64: 8, 128>}]} {
    %c0 = arith.constant 0 : index
    %c0_0 = arith.constant 0 : index
    %0 = vector.load %arg1[%c0, %c0_0] : memref<8x128xf32, #tpu.memory_space<vmem>>, vector<8x128xf32>
    %c0_1 = arith.constant 0 : index
    %c0_2 = arith.constant 0 : index
    %1 = vector.load %arg2[%c0_1, %c0_2] : memref<128x128xf32, #tpu.memory_space<vmem>>, vector<128x128xf32>
    %c0_3 = arith.constant 0 : index
    %c0_4 = arith.constant 0 : index
    %2 = vector.load %arg3[%c0_3, %c0_4] : memref<3x128xf32, #tpu.memory_space<vmem>>, vector<3x128xf32>
    %3 = vector.extract_strided_slice %2 {offsets = [0, 0], sizes = [1, 128], strides = [1, 1]} : vector<3x128xf32> to vector<1x128xf32>
    %4 = vector.extract_strided_slice %2 {offsets = [1, 0], sizes = [1, 128], strides = [1, 1]} : vector<3x128xf32> to vector<1x128xf32>
    %5 = vector.extract_strided_slice %2 {offsets = [2, 0], sizes = [1, 128], strides = [1, 1]} : vector<3x128xf32> to vector<1x128xf32>
    %cst = arith.constant dense<0.000000e+00> : vector<8xf32>
    %6 = vector.multi_reduction <add>, %0, %cst [1] : vector<8x128xf32> to vector<8xf32>
    %7 = vector.shape_cast %6 : vector<8xf32> to vector<8x1xf32>
    %cst_5 = arith.constant 7.812500e-03 : f32
    %8 = vector.broadcast %cst_5 : f32 to vector<8x1xf32>
    %9 = arith.mulf %7, %8 : vector<8x1xf32>
    %10 = vector.broadcast %9 : vector<8x1xf32> to vector<8x128xf32>
    %11 = arith.subf %0, %10 : vector<8x128xf32>
    %12 = arith.mulf %11, %11 : vector<8x128xf32>
    %cst_6 = arith.constant dense<0.000000e+00> : vector<8xf32>
    %13 = vector.multi_reduction <add>, %12, %cst_6 [1] : vector<8x128xf32> to vector<8xf32>
    %14 = vector.shape_cast %13 : vector<8xf32> to vector<8x1xf32>
    %cst_7 = arith.constant 0.00787401571 : f32
    %15 = vector.broadcast %cst_7 : f32 to vector<8x1xf32>
    %16 = arith.mulf %14, %15 : vector<8x1xf32>
    %17 = math.sqrt %16 : vector<8x1xf32>
    %cst_8 = arith.constant 9.99999997E-7 : f32
    %18 = vector.broadcast %cst_8 : f32 to vector<8x1xf32>
    %19 = arith.addf %17, %18 : vector<8x1xf32>
    %cst_9 = arith.constant 1.000000e+00 : f32
    %20 = vector.broadcast %cst_9 : f32 to vector<8x1xf32>
    %21 = arith.divf %20, %19 : vector<8x1xf32>
    %22 = vector.broadcast %4 : vector<1x128xf32> to vector<8x128xf32>
    %23 = arith.mulf %22, %11 : vector<8x128xf32>
    %24 = vector.broadcast %21 : vector<8x1xf32> to vector<8x128xf32>
    %25 = arith.mulf %23, %24 : vector<8x128xf32>
    %26 = vector.broadcast %5 : vector<1x128xf32> to vector<8x128xf32>
    %27 = arith.addf %25, %26 : vector<8x128xf32>
    %cst_10 = arith.constant dense<0.000000e+00> : vector<8x128xf32>
    %28 = tpu.matmul %27, %1, %cst_10 {dimension_numbers = #tpu.dot_dimension_numbers<[1], [0], [0], [1], [0, 0, 1, 1], [], []>} : vector<8x128xf32>, vector<128x128xf32>, vector<8x128xf32> -> vector<8x128xf32>
    %29 = vector.broadcast %3 : vector<1x128xf32> to vector<8x128xf32>
    %30 = arith.addf %28, %29 : vector<8x128xf32>
    %31 = arith.addf %0, %30 : vector<8x128xf32>
    %c0_11 = arith.constant 0 : index
    %c0_12 = arith.constant 0 : index
    %32 = vector.load %arg4[%c0_11, %c0_12] : memref<8x128xf32, #tpu.memory_space<vmem>>, vector<8x128xf32>
    tpu.vector_store %arg4[%c0_11, %c0_12], %31 {strides = array<i32>} : memref<8x128xf32, #tpu.memory_space<vmem>>, vector<8x128xf32>,
    return
  }
  func.func @transform_0(%arg0: i32) -> (i32, i32) {
    %c0_i32 = arith.constant 0 : i32
    %c0_i32_0 = arith.constant 0 : i32
    return %arg0, %c0_i32 : i32, i32
  }
  func.func @transform_1(%arg0: i32) -> (i32, i32) {
    %c0_i32 = arith.constant 0 : i32
    %c0_i32_0 = arith.constant 0 : i32
    %c0_i32_1 = arith.constant 0 : i32
    return %c0_i32, %c0_i32_0 : i32, i32
  }
  func.func @transform_2(%arg0: i32) -> (i32, i32) {
    %c0_i32 = arith.constant 0 : i32
    %c0_i32_0 = arith.constant 0 : i32
    %c0_i32_1 = arith.constant 0 : i32
    return %c0_i32, %c0_i32_0 : i32, i32
  }
  func.func @transform_3(%arg0: i32) -> (i32, i32) {
    %c0_i32 = arith.constant 0 : i32
    %c0_i32_0 = arith.constant 0 : i32
    return %arg0, %c0_i32 : i32, i32
  }
}

module attributes {stable_mosaic.version = 11 : i64} {
  func.func @_sublayer_connection_kernel(%arg0: i32, %arg1: memref<8x128xf32, #tpu.memory_space<vmem>>, %arg2: memref<128x128xf32, #tpu.memory_space<vmem>>, %arg3: memref<3x128xf32, #tpu.memory_space<vmem>>, %arg4: memref<8x128xf32, #tpu.memory_space<vmem>>) attributes {dimension_semantics = [#tpu.dimension_semantics<parallel>], iteration_bounds = array<i64: 2>, scalar_prefetch = 0 : i64, scratch_operands = 0 : i64, tpu.core_type = #tpu.core_type<tc>, window_params = [{transform_indices = @transform_0, window_bounds = array<i64: 8, 128>}, {pipeline_mode = #tpu.pipeline_mode<synchronous>, transform_indices = @transform_1, window_bounds = array<i64: 128, 128>}, {pipeline_mode = #tpu.pipeline_mode<synchronous>, transform_indices = @transform_2, window_bounds = array<i64: 3, 128>}, {transform_indices = @transform_3, window_bounds = array<i64: 8, 128>}]} {
    %c0 = arith.constant 0 : index
    %c0_0 = arith.constant 0 : index
    %0 = vector.load %arg1[%c0, %c0_0] : memref<8x128xf32, #tpu.memory_space<vmem>>, vector<8x128xf32>
    %c0_1 = arith.constant 0 : index
    %c0_2 = arith.constant 0 : index
    %1 = vector.load %arg2[%c0_1, %c0_2] : memref<128x128xf32, #tpu.memory_space<vmem>>, vector<128x128xf32>
    %c0_3 = arith.constant 0 : index
    %c0_4 = arith.constant 0 : index
    %2 = vector.load %arg3[%c0_3, %c0_4] : memref<3x128xf32, #tpu.memory_space<vmem>>, vector<3x128xf32>
    %3 = vector.extract_strided_slice %2 {offsets = [0, 0], sizes = [1, 128], strides = [1, 1]} : vector<3x128xf32> to vector<1x128xf32>
    %4 = vector.extract_strided_slice %2 {offsets = [1, 0], sizes = [1, 128], strides = [1, 1]} : vector<3x128xf32> to vector<1x128xf32>
    %5 = vector.extract_strided_slice %2 {offsets = [2, 0], sizes = [1, 128], strides = [1, 1]} : vector<3x128xf32> to vector<1x128xf32>
    %cst = arith.constant dense<0.000000e+00> : vector<8xf32>
    %6 = vector.multi_reduction <add>, %0, %cst [1] : vector<8x128xf32> to vector<8xf32>
    %7 = vector.shape_cast %6 : vector<8xf32> to vector<8x1xf32>
    %cst_5 = arith.constant 7.812500e-03 : f32
    %8 = vector.broadcast %cst_5 : f32 to vector<8x1xf32>
    %9 = arith.mulf %7, %8 : vector<8x1xf32>
    %10 = vector.broadcast %9 : vector<8x1xf32> to vector<8x128xf32>
    %11 = arith.subf %0, %10 : vector<8x128xf32>
    %12 = arith.mulf %11, %11 : vector<8x128xf32>
    %cst_6 = arith.constant dense<0.000000e+00> : vector<8xf32>
    %13 = vector.multi_reduction <add>, %12, %cst_6 [1] : vector<8x128xf32> to vector<8xf32>
    %14 = vector.shape_cast %13 : vector<8xf32> to vector<8x1xf32>
    %cst_7 = arith.constant 0.00787401571 : f32
    %15 = vector.broadcast %cst_7 : f32 to vector<8x1xf32>
    %16 = arith.mulf %14, %15 : vector<8x1xf32>
    %17 = math.sqrt %16 : vector<8x1xf32>
    %cst_8 = arith.constant 9.99999997E-7 : f32
    %18 = vector.broadcast %cst_8 : f32 to vector<8x1xf32>
    %19 = arith.addf %17, %18 : vector<8x1xf32>
    %cst_9 = arith.constant 1.000000e+00 : f32
    %20 = vector.broadcast %cst_9 : f32 to vector<8x1xf32>
    %21 = arith.divf %20, %19 : vector<8x1xf32>
    %22 = vector.broadcast %4 : vector<1x128xf32> to vector<8x128xf32>
    %23 = arith.mulf %22, %11 : vector<8x128xf32>
    %24 = vector.broadcast %21 : vector<8x1xf32> to vector<8x128xf32>
    %25 = arith.mulf %23, %24 : vector<8x128xf32>
    %26 = vector.broadcast %5 : vector<1x128xf32> to vector<8x128xf32>
    %27 = arith.addf %25, %26 : vector<8x128xf32>
    %cst_10 = arith.constant dense<0.000000e+00> : vector<8x128xf32>
    %28 = tpu.matmul %27, %1, %cst_10 {dimension_numbers = #tpu.dot_dimension_numbers<[1], [0], [0], [1], [0, 0, 1, 1], [], []>} : vector<8x128xf32>, vector<128x128xf32>, vector<8x128xf32> -> vector<8x128xf32>
    %29 = vector.broadcast %3 : vector<1x128xf32> to vector<8x128xf32>
    %30 = arith.addf %28, %29 : vector<8x128xf32>
    %31 = arith.addf %0, %30 : vector<8x128xf32>
    %c0_11 = arith.constant 0 : index
    %c0_12 = arith.constant 0 : index
    %32 = vector.load %arg4[%c0_11, %c0_12] : memref<8x128xf32, #tpu.memory_space<vmem>>, vector<8x128xf32>
    tpu.vector_store %arg4[%c0_11, %c0_12], %31 {strides = array<i32>} : memref<8x128xf32, #tpu.memory_space<vmem>>, vector<8x128xf32>,
    return
  }
  func.func @transform_0(%arg0: i32) -> (i32, i32) {
    %c0_i32 = arith.constant 0 : i32
    %c0_i32_0 = arith.constant 0 : i32
    return %arg0, %c0_i32 : i32, i32
  }
  func.func @transform_1(%arg0: i32) -> (i32, i32) {
    %c0_i32 = arith.constant 0 : i32
    %c0_i32_0 = arith.constant 0 : i32
    %c0_i32_1 = arith.constant 0 : i32
    return %c0_i32, %c0_i32_0 : i32, i32
  }
  func.func @transform_2(%arg0: i32) -> (i32, i32) {
    %c0_i32 = arith.constant 0 : i32
    %c0_i32_0 = arith.constant 0 : i32
    %c0_i32_1 = arith.constant 0 : i32
    return %c0_i32, %c0_i32_0 : i32, i32
  }
  func.func @transform_3(%arg0: i32) -> (i32, i32) {
    %c0_i32 = arith.constant 0 : i32
    %c0_i32_0 = arith.constant 0 : i32
    return %arg0, %c0_i32 : i32, i32
  }
}

</mosaic_0001>

<llo_original>
// kernel: tpu_custom_call.1
$region0: #{tpu_custom_call.1}
  #allocation0 [shape = 'u32[]', space=smem, size = 0x4, offset = 0x4, fixed_abs, tag = 'smem constant byte address 0x4 - core index']
  #allocation1 [shape = 'u32[144,128]{1,0:T(1,128)}', space=vmem, size = 0x12000, scoped, tag = 'internal scratch']
  %s0 = inlined_call_operand.hbm [shape: f32[16,128], index: 0, kind: input, shape index: {}]
  %s1 = inlined_call_operand.hbm [shape: f32[128,128], index: 1, kind: input, shape index: {}]
  %s2 = inlined_call_operand.vmem [shape: f32[3,128], index: 2, kind: input, shape index: {}]
  %s3 = inlined_call_operand.hbm [shape: f32[16,128], index: 3, kind: output, shape index: {}]
  %s4 = sld [smem:[#allocation0]]
  $region53: #{tpu_custom_call.1} parent=0
    _
  %s6 = ssub.s32 1, %s4
  %s7 = scalar_select 0, %s6, %s4
  $region1: #{tpu_custom_call.1} parent=0
    #allocation2 [shape = 'u8[8192]{0}', space=vmem, size = 0x2000, scoped, tag = 'input window, operand 0']
    #allocation3 [shape = 's32[2]{0}', space=sflag, size = 0x8, scoped, tag = 'scoped memory for tpu_custom_call.1']
    #allocation4 [shape = 's32[2]{0}', space=sflag, size = 0x8, scoped, tag = 'scoped memory for tpu_custom_call.1']
    #allocation5 [shape = 'u8[65536]{0}', space=vmem, size = 0x10000, scoped, tag = 'input window, operand 1, single buffered']
    #allocation6 [shape = 's32[1]{0}', space=sflag, size = 0x4, scoped, tag = 'scoped memory for tpu_custom_call.1']
    #allocation7 [shape = 'u8[8192]{0}', space=vmem, size = 0x2000, scoped, tag = 'output window, operand 0']
    %8 = vsyncpa [#allocation3], 0
    %s9 = scalar_lea.sflag [#allocation3], 1
    %10 = vsyncpa %s9, 0
    %11 = vsyncpa [#allocation6], 0
    %12 = vsyncpa [#allocation4], 0
    %s13 = scalar_lea.sflag [#allocation4], 1
    %14 = vsyncpa %s13, 0
    loop: start=0, step=1, limit=4
    $region2: #{tpu_custom_call.1} parent=1 // loop_pre_header
      _
    $region3: #{tpu_custom_call.1} parent=1 // loop_header
      %s16 = sphi 0, %s20
      %p17 = scmp.ge.s32.totalorder %s16, 4
      %s26 = sphi 0, %s28
      %s29 = sphi 0, %s26
      %s30 = sphi 0, %s29
      %s46 = sphi 0, %s30
      %s50 = sphi 0, %s50
      %s52 = sphi 0, %s50
      %s53 = sphi 0, %s52
      %s67 = sphi 0, %s53
      %s71 = sphi 0, %s71
      %s73 = sphi 0, %s71
      %s74 = sphi 0, %s73
      %s88 = sphi 0, %s74
      %s94 = sphi 0, %s96
      %s97 = sphi 0, %s94
      %s98 = sphi 0, %s97
      %s114 = sphi 0, %s98
    $region4: #{tpu_custom_call.1} parent=1 // loop_header_branch
      %19 = sbr.rel (%p17) target = $region8
    $region5: #{tpu_custom_call.1} parent=1 // loop_body
      %s21 = ssub.s32 %s16, 1
      %s22 = ssub.s32 %s16, 2
      %s23 = sadd.s32 %s16, 1
      %s24 = ssub.s32 %s16, %s23
      %p25 = scmp.eq.s32.totalorder %s24, 0
      %s27 = sadd.s32 %s26, 1
      %s28 = scalar_select %p25, %s26, %s27
      %p31 = pneg %p25
      %p32 = scmp.eq.s32.totalorder %s16, 1
      %p33 = por %p31, %p32
      %p34 = scmp.ne.s32.totalorder %s26, %s29
      %p35 = scmp.eq.s32.totalorder %s16, 0
      %p36 = por %p34, %p35
      %p37 = scmp.ne.s32.totalorder %s26, %s29
      %p38 = scmp.eq.s32.totalorder %s21, 1
      %p39 = por %p37, %p38
      %p40 = scmp.ne.s32.totalorder %s29, %s30
      %p41 = scmp.eq.s32.totalorder %s21, 0
      %p42 = por %p40, %p41
      %p43 = scmp.ne.s32.totalorder %s29, %s30
      %p44 = scmp.eq.s32.totalorder %s22, 1
      %p45 = por %p43, %p44
      %p47 = scmp.ne.s32.totalorder %s30, %s46
      %p48 = scmp.eq.s32.totalorder %s22, 0
      %p49 = por %p47, %p48
      %s51 = sadd.s32 %s50, 1
      %p54 = scmp.eq.s32.totalorder %s16, 1
      %p55 = scmp.ne.s32.totalorder %s50, %s52
      %p56 = scmp.eq.s32.totalorder %s16, 0
      %p57 = por %p55, %p56
      %p58 = scmp.ne.s32.totalorder %s50, %s52
      %p59 = scmp.eq.s32.totalorder %s21, 1
      %p60 = por %p58, %p59
      %p61 = scmp.ne.s32.totalorder %s52, %s53
      %p62 = scmp.eq.s32.totalorder %s21, 0
      %p63 = por %p61, %p62
      %p64 = scmp.ne.s32.totalorder %s52, %s53
      %p65 = scmp.eq.s32.totalorder %s22, 1
      %p66 = por %p64, %p65
      %p68 = scmp.ne.s32.totalorder %s53, %s67
      %p69 = scmp.eq.s32.totalorder %s22, 0
      %p70 = por %p68, %p69
      %s72 = sadd.s32 %s71, 1
      %p75 = scmp.eq.s32.totalorder %s16, 1
      %p76 = scmp.ne.s32.totalorder %s71, %s73
      %p77 = scmp.eq.s32.totalorder %s16, 0
      %p78 = por %p76, %p77
      %p79 = scmp.ne.s32.totalorder %s71, %s73
      %p80 = scmp.eq.s32.totalorder %s21, 1
      %p81 = por %p79, %p80
      %p82 = scmp.ne.s32.totalorder %s73, %s74
      %p83 = scmp.eq.s32.totalorder %s21, 0
      %p84 = por %p82, %p83
      %p85 = scmp.ne.s32.totalorder %s73, %s74
      %p86 = scmp.eq.s32.totalorder %s22, 1
      %p87 = por %p85, %p86
      %p89 = scmp.ne.s32.totalorder %s74, %s88
      %p90 = scmp.eq.s32.totalorder %s22, 0
      %p91 = por %p89, %p90
      %s92 = ssub.s32 %s16, %s23
      %p93 = scmp.eq.s32.totalorder %s92, 0
      %s95 = sadd.s32 %s94, 1
      %s96 = scalar_select %p93, %s94, %s95
      %p99 = pneg %p93
      %p100 = scmp.eq.s32.totalorder %s16, 1
      %p101 = por %p99, %p100
      %p102 = scmp.ne.s32.totalorder %s94, %s97
      %p103 = scmp.eq.s32.totalorder %s16, 0
      %p104 = por %p102, %p103
      %p105 = scmp.ne.s32.totalorder %s94, %s97
      %p106 = scmp.eq.s32.totalorder %s21, 1
      %p107 = por %p105, %p106
      %p108 = scmp.ne.s32.totalorder %s97, %s98
      %p109 = scmp.eq.s32.totalorder %s21, 0
      %p110 = por %p108, %p109
      %p111 = scmp.ne.s32.totalorder %s97, %s98
      %p112 = scmp.eq.s32.totalorder %s22, 1
      %p113 = por %p111, %p112
      %p115 = scmp.ne.s32.totalorder %s98, %s114
      %p116 = scmp.eq.s32.totalorder %s22, 0
      %p117 = por %p115, %p116
      %p118 = scmp.le.s32.totalorder 1, %s16
      %p119 = scmp.lt.s32.totalorder %s16, 3
      %p120 = pnand %p118, %p119
      %p121 = pneg %p120
      // Predicated region
      $region9: #{tpu_custom_call.1} parent=5 // pred_check
        _
      $region10: #{tpu_custom_call.1} parent=5 // pred_check_branch
        %123 = sbr.rel (%p120) target = $region12
      $region11: #{tpu_custom_call.1} parent=5 // pred_region
        %s124 = ssub.s32 %s16, 1
        // Predicated region
        $region13: #{tpu_custom_call.1} parent=11 // pred_check
          %p125 = pneg %p63
        $region14: #{tpu_custom_call.1} parent=11 // pred_check_branch
          %127 = sbr.rel (%p125) target = $region16
        $region15: #{tpu_custom_call.1} parent=11 // pred_region
          %s129 = ssub.s32 2048, 2048
          %130 = vsyncadd [#allocation6], %s129
          %s131 = sshll.u32 [#allocation5], 4
          %s132 = int_to_ptr.vmem [resolvable:$true] %s131
          %137 = dma.hbm_to_vmem [thread:$0]  %s1, 2048, %s132, [#allocation6], 128, 128, 8
        $region16: #{tpu_custom_call.1} parent=11 // pred_fallthru
          _
        // Predicated region
        $region17: #{tpu_custom_call.1} parent=11 // pred_check
          %p138 = pneg %p84
        $region18: #{tpu_custom_call.1} parent=11 // pred_check_branch
          %140 = sbr.rel (%p138) target = $region20
        $region19: #{tpu_custom_call.1} parent=11 // pred_region
          _
        $region20: #{tpu_custom_call.1} parent=11 // pred_fallthru
          _
      $region12: #{tpu_custom_call.1} parent=5 // pred_fallthru
        _
      %p141 = scmp.lt.s32.totalorder %s16, 2
      // Predicated region
      $region21: #{tpu_custom_call.1} parent=5 // pred_check
        %p142 = pneg %p141
      $region22: #{tpu_custom_call.1} parent=5 // pred_check_branch
        %144 = sbr.rel (%p142) target = $region24
      $region23: #{tpu_custom_call.1} parent=5 // pred_region
        // Predicated region
        $region25: #{tpu_custom_call.1} parent=23 // pred_check
          %p145 = pneg %p36
        $region26: #{tpu_custom_call.1} parent=23 // pred_check_branch
          %147 = sbr.rel (%p145) target = $region28
        $region27: #{tpu_custom_call.1} parent=23 // pred_region
          %s148 = sand.u32 %s26, 1
          %s149 = scalar_lea.sflag [#allocation3], %s148
          %s150 = sand.u32 %s26, 1
          %s151 = smul.addr %s150, 8
          %s152 = scalar_lea.vmem [#allocation2], %s151
          %s154 = ssub.s32 128, 128
          %155 = vsyncadd %s149, %s154
          %s156 = smul.addr %s16, 128
          %s157 = scalar_lea.hbm %s0, %s156
          %s159 = sshll.u32 %s152, 4
          %s160 = int_to_ptr.vmem [resolvable:$true] %s159
          %162 = dma.hbm_to_vmem [thread:$0]  %s157, 128, %s160, %s149
        $region28: #{tpu_custom_call.1} parent=23 // pred_fallthru
          _
      $region24: #{tpu_custom_call.1} parent=5 // pred_fallthru
        _
      %p163 = scmp.le.s32.totalorder 1, %s16
      %p164 = scmp.lt.s32.totalorder %s16, 3
      %p165 = pnand %p163, %p164
      %p166 = pneg %p165
      // Predicated region
      $region29: #{tpu_custom_call.1} parent=5 // pred_check
        _
      $region30: #{tpu_custom_call.1} parent=5 // pred_check_branch
        %168 = sbr.rel (%p165) target = $region32
      $region31: #{tpu_custom_call.1} parent=5 // pred_region
        %s169 = ssub.s32 %s16, 1
        %s170 = sand.u32 %s29, 1
        %s171 = scalar_lea.sflag [#allocation3], %s170
        %s172 = sand.u32 %s29, 1
        %s173 = smul.addr %s172, 8
        %s174 = scalar_lea.vmem [#allocation2], %s173
        // Predicated region
        $region33: #{tpu_custom_call.1} parent=31 // pred_check
          %p175 = pneg %p42
        $region34: #{tpu_custom_call.1} parent=31 // pred_check_branch
          %177 = sbr.rel (%p175) target = $region36
        $region35: #{tpu_custom_call.1} parent=31 // pred_region
          %178 = dma.done %s171, 128
        $region36: #{tpu_custom_call.1} parent=31 // pred_fallthru
          _
        // Predicated region
        $region37: #{tpu_custom_call.1} parent=31 // pred_check
          %p179 = pneg %p63
        $region38: #{tpu_custom_call.1} parent=31 // pred_check_branch
          %181 = sbr.rel (%p179) target = $region40
        $region39: #{tpu_custom_call.1} parent=31 // pred_region
          %182 = dma.done [#allocation6], 2048
        $region40: #{tpu_custom_call.1} parent=31 // pred_fallthru
          _
        %s183 = sand.u32 %s29, 1
        %s184 = scalar_lea.sflag [#allocation3], %s183
        %s185 = sand.u32 %s29, 1
        %s186 = smul.addr %s185, 8
        %s187 = scalar_lea.vmem [#allocation2], %s186
        %p188 = pneg %p42
        %p189 = pneg %p39
        %p190 = pneg %p63
        %p191 = pneg %p60
        %p192 = pneg %p84
        %p193 = pneg %p81
        %p194 = pneg %p110
        %p195 = pneg %p107
        %s196 = sand.u32 %s97, 1
        %s197 = scalar_lea.sflag [#allocation4], %s196
        %s198 = sand.u32 %s97, 1
        %s199 = smul.addr %s198, 8
        %s200 = scalar_lea.vmem [#allocation7], %s199
        %v201 = vld [vmem:[%s174] sm:$0xff]
        %v202 = vld [vmem:[#allocation5] sm:$0xff]
        %v203 = vld [vmem:[#allocation5 + $0x8] sm:$0xff]
        %v204 = vld [vmem:[#allocation5 + $0x10] sm:$0xff]
        %v205 = vld [vmem:[#allocation5 + $0x18] sm:$0xff]
        %v206 = vld [vmem:[#allocation5 + $0x20] sm:$0xff]
        %v207 = vld [vmem:[#allocation5 + $0x28] sm:$0xff]
        %v208 = vld [vmem:[#allocation5 + $0x30] sm:$0xff]
        %v209 = vld [vmem:[#allocation5 + $0x38] sm:$0xff]
        %v210 = vld [vmem:[#allocation5 + $0x40] sm:$0xff]
        %v211 = vld [vmem:[#allocation5 + $0x48] sm:$0xff]
        %v212 = vld [vmem:[#allocation5 + $0x50] sm:$0xff]
        %v213 = vld [vmem:[#allocation5 + $0x58] sm:$0xff]
        %v214 = vld [vmem:[#allocation5 + $0x60] sm:$0xff]
        %v215 = vld [vmem:[#allocation5 + $0x68] sm:$0xff]
        %v216 = vld [vmem:[#allocation5 + $0x70] sm:$0xff]
        %v217 = vld [vmem:[#allocation5 + $0x78] sm:$0xff]
        %v218 = vld [vmem:[%s2] sm:$0x7]
        %219 = vadd.xlane.f32.xlu0 %v201
        %v220 = vpop.xlane.xlu0 %219
        %v221 = vmul.f32 %v220, 0.0078125
        %v222 = vsub.f32 %v201, %v221
        %v223 = vmul.f32 %v222, %v222
        %224 = vadd.xlane.f32.xlu0 %v223
        %v225 = vpop.xlane.xlu0 %224
        %v226 = vmul.f32 %v225, 0.007874016
        %v227 = vrsqrt.pop %v226
        %v228 = vmul.f32 %v226, %v227
        %vm229 = vcmp.eq.f32.partialorder %v226, inf
        %v230 = vsel %vm229, %v226, %v228
        %vm231 = vcmp.eq.f32.partialorder %v226, 0.0
        %v232 = vand.u32 %v226, 2147483648
        %v233 = vsel %vm231, %v232, %v230
        %v234 = vadd.f32 %v233, 1e-06
        %v235 = vrcp.pop %v234
        %v236 = vmul.f32 1.0, %v235
        %v237 = vlaneseq
        %v238 = vshrl.u32 %v237, 7
        %v239 = vsub.s32 1, %v238
        %v240 = vrot.slane %v218, %v239
        %v241 = vmul.f32 %v240, %v222
        %v242 = vmul.f32 %v241, %v236
        %v243 = vlaneseq
        %v244 = vshrl.u32 %v243, 7
        %v245 = vsub.s32 2, %v244
        %v246 = vrot.slane %v218, %v245
        %v247 = vadd.f32 %v242, %v246
        %v248 = vlaneseq
        %v249 = vshrl.u32 %v248, 7
        %v250 = vsub.s32 0, %v249
        %v251 = vrot.slane %v218, %v250
        %252 = vmatprep.subr.mxu0 0.0
        %253 = vmatpush1.msra.mxu0 %v202
        %254 = vmatprep.subr.mxu0 0.0
        %255 = vmatpush1.msra.mxu0 %v203
        %256 = vmatprep.subr.mxu0 0.0
        %257 = vmatpush1.msra.mxu0 %v204
        %258 = vmatprep.subr.mxu0 0.0
        %259 = vmatpush1.msra.mxu0 %v205
        %260 = vmatprep.subr.mxu0 0.0
        %261 = vmatpush1.msra.mxu0 %v206
        %262 = vmatprep.subr.mxu0 0.0
        %263 = vmatpush1.msra.mxu0 %v207
        %264 = vmatprep.subr.mxu0 0.0
        %265 = vmatpush1.msra.mxu0 %v208
        %266 = vmatprep.subr.mxu0 0.0
        %267 = vmatpush1.msra.mxu0 %v209
        %268 = vmatprep.subr.mxu0 0.0
        %269 = vmatpush1.msra.mxu0 %v210
        %270 = vmatprep.subr.mxu0 0.0
        %271 = vmatpush1.msra.mxu0 %v211
        %272 = vmatprep.subr.mxu0 0.0
        %273 = vmatpush1.msra.mxu0 %v212
        %274 = vmatprep.subr.mxu0 0.0
        %275 = vmatpush1.msra.mxu0 %v213
        %276 = vmatprep.subr.mxu0 0.0
        %277 = vmatpush1.msra.mxu0 %v214
        %278 = vmatprep.subr.mxu0 0.0
        %279 = vmatpush1.msra.mxu0 %v215
        %280 = vmatprep.subr.mxu0 0.0
        %281 = vmatpush1.msra.mxu0 %v216
        %282 = vmatprep.subr.mxu0 0.0
        %283 = vmatpush1.msra.mxu0 %v217
        %284 = vmatprep.subr.mxu0 0.0
        %285 = vmatpush1.msra.mxu0 0.0
        %286 = vmatprep.subr.mxu0 0.0
        %287 = vmatpush1.msra.mxu0 0.0
        %288 = vmatprep.subr.mxu0 0.0
        %289 = vmatpush1.msra.mxu0 0.0
        %290 = vmatprep.subr.mxu0 0.0
        %291 = vmatpush1.msra.mxu0 0.0
        %292 = vmatprep.subr.mxu0 0.0
        %293 = vmatpush1.msra.mxu0 0.0
        %294 = vmatprep.subr.mxu0 0.0
        %295 = vmatpush1.msra.mxu0 0.0
        %296 = vmatprep.subr.mxu0 0.0
        %297 = vmatpush1.msra.mxu0 0.0
        %298 = vmatprep.subr.mxu0 0.0
        %299 = vmatpush1.msra.mxu0 0.0
        %300 = vmatprep.subr.mxu0 0.0
        %301 = vmatpush1.msra.mxu0 0.0
        %302 = vmatprep.subr.mxu0 0.0
        %303 = vmatpush1.msra.mxu0 0.0
        %304 = vmatprep.subr.mxu0 0.0
        %305 = vmatpush1.msra.mxu0 0.0
        %306 = vmatprep.subr.mxu0 0.0
        %307 = vmatpush1.msra.mxu0 0.0
        %308 = vmatprep.subr.mxu0 0.0
        %309 = vmatpush1.msra.mxu0 0.0
        %310 = vmatprep.subr.mxu0 0.0
        %311 = vmatpush1.msra.mxu0 0.0
        %312 = vmatprep.subr.mxu0 0.0
        %313 = vmatpush1.msra.mxu0 0.0
        %314 = vmatprep.subr.mxu0 0.0
        %315 = vmatpush1.msra.mxu0 0.0
        %316 = vmatprep.mubr.f32.mxu0 0.0
        %317 = vmatmul.mubr.f32.gmra.mrb[0].mxu0 %v247
        %v318 = vpop.f32.mrb[0].mxu0
        %v319 = vadd.f32 %v251, %v318
        %v320 = vpop.f32.mrb[0].mxu0
        %321 = vdwg.mxu0
        %v322 = vadd.f32 %v201, %v319
        %323 = vst [vmem:[%s200] sm:$0xff] %v322
        %s324 = sand.u32 %s97, 1
        %s325 = scalar_lea.sflag [#allocation4], %s324
        %s326 = sand.u32 %s97, 1
        %s327 = smul.addr %s326, 8
        %s328 = scalar_lea.vmem [#allocation7], %s327
        // Predicated region
        $region41: #{tpu_custom_call.1} parent=31 // pred_check
          %p329 = pneg %p107
        $region42: #{tpu_custom_call.1} parent=31 // pred_check_branch
          %331 = sbr.rel (%p329) target = $region44
        $region43: #{tpu_custom_call.1} parent=31 // pred_region
          %s333 = ssub.s32 128, 128
          %334 = vsyncadd %s325, %s333
          %s335 = smul.addr %s21, 128
          %s336 = scalar_lea.hbm %s3, %s335
          %s338 = sshll.u32 %s328, 4
          %s339 = int_to_ptr.vmem [resolvable:$true] %s338
          %341 = dma.vmem_to_hbm [thread:$0]  %s339, 128, %s336, %s325
        $region44: #{tpu_custom_call.1} parent=31 // pred_fallthru
          _
      $region32: #{tpu_custom_call.1} parent=5 // pred_fallthru
        _
      %p342 = scmp.le.s32.totalorder 2, %s16
      // Predicated region
      $region45: #{tpu_custom_call.1} parent=5 // pred_check
        %p343 = pneg %p342
      $region46: #{tpu_custom_call.1} parent=5 // pred_check_branch
        %345 = sbr.rel (%p343) target = $region48
      $region47: #{tpu_custom_call.1} parent=5 // pred_region
        %s346 = ssub.s32 %s16, 2
        // Predicated region
        $region49: #{tpu_custom_call.1} parent=47 // pred_check
          %p347 = pneg %p113
        $region50: #{tpu_custom_call.1} parent=47 // pred_check_branch
          %349 = sbr.rel (%p347) target = $region52
        $region51: #{tpu_custom_call.1} parent=47 // pred_region
          %s350 = sand.u32 %s98, 1
          %s351 = scalar_lea.sflag [#allocation4], %s350
          %s352 = sand.u32 %s98, 1
          %s353 = smul.addr %s352, 8
          %s354 = scalar_lea.vmem [#allocation7], %s353
          %355 = dma.done %s351, 128
        $region52: #{tpu_custom_call.1} parent=47 // pred_fallthru
          _
      $region48: #{tpu_custom_call.1} parent=5 // pred_fallthru
        _
    $region6: #{tpu_custom_call.1} parent=1 // loop_footer
      %s20 = sadd.s32 1, %s16
    $region7: #{tpu_custom_call.1} parent=1 // loop_footer_branch
      %15 = sbr.rel target = $region3
    $region8: #{tpu_custom_call.1} parent=1 // loop_exit
      _
    %356 = vsyncpa [#allocation3], 1
    %s357 = scalar_lea.sflag [#allocation3], 1
    %358 = vsyncpa %s357, 1
    %359 = vsyncpa [#allocation6], 1
    %360 = vsyncpa [#allocation4], 1
    %s361 = scalar_lea.sflag [#allocation4], 1
    %362 = vsyncpa %s361, 1

// kernel: tpu_custom_call.1
$region0: #{tpu_custom_call.1}
  #allocation0 [shape = 'u32[]', space=smem, size = 0x4, offset = 0x4, fixed_abs, tag = 'smem constant byte address 0x4 - core index']
  #allocation1 [shape = 'u32[144,128]{1,0:T(1,128)}', space=vmem, size = 0x12000, scoped, tag = 'internal scratch']
  %s0 = inlined_call_operand.hbm [shape: f32[16,128], index: 0, kind: input, shape index: {}]
  %s1 = inlined_call_operand.hbm [shape: f32[128,128], index: 1, kind: input, shape index: {}]
  %s2 = inlined_call_operand.vmem [shape: f32[3,128], index: 2, kind: input, shape index: {}]
  %s3 = inlined_call_operand.hbm [shape: f32[16,128], index: 3, kind: output, shape index: {}]
  %s4 = sld [smem:[#allocation0]]
  $region53: #{tpu_custom_call.1} parent=0
    _
  %s6 = ssub.s32 1, %s4
  %s7 = scalar_select 0, %s6, %s4
  $region1: #{tpu_custom_call.1} parent=0
    #allocation2 [shape = 'u8[8192]{0}', space=vmem, size = 0x2000, scoped, tag = 'input window, operand 0']
    #allocation3 [shape = 's32[2]{0}', space=sflag, size = 0x8, scoped, tag = 'scoped memory for tpu_custom_call.1']
    #allocation4 [shape = 's32[2]{0}', space=sflag, size = 0x8, scoped, tag = 'scoped memory for tpu_custom_call.1']
    #allocation5 [shape = 'u8[65536]{0}', space=vmem, size = 0x10000, scoped, tag = 'input window, operand 1, single buffered']
    #allocation6 [shape = 's32[1]{0}', space=sflag, size = 0x4, scoped, tag = 'scoped memory for tpu_custom_call.1']
    #allocation7 [shape = 'u8[8192]{0}', space=vmem, size = 0x2000, scoped, tag = 'output window, operand 0']
    %8 = vsyncpa [#allocation3], 0
    %s9 = scalar_lea.sflag [#allocation3], 1
    %10 = vsyncpa %s9, 0
    %11 = vsyncpa [#allocation6], 0
    %12 = vsyncpa [#allocation4], 0
    %s13 = scalar_lea.sflag [#allocation4], 1
    %14 = vsyncpa %s13, 0
    loop: start=0, step=1, limit=4
    $region2: #{tpu_custom_call.1} parent=1 // loop_pre_header
      _
    $region3: #{tpu_custom_call.1} parent=1 // loop_header
      %s16 = sphi 0, %s20
      %p17 = scmp.ge.s32.totalorder %s16, 4
      %s26 = sphi 0, %s28
      %s29 = sphi 0, %s26
      %s30 = sphi 0, %s29
      %s46 = sphi 0, %s30
      %s50 = sphi 0, %s50
      %s52 = sphi 0, %s50
      %s53 = sphi 0, %s52
      %s67 = sphi 0, %s53
      %s71 = sphi 0, %s71
      %s73 = sphi 0, %s71
      %s74 = sphi 0, %s73
      %s88 = sphi 0, %s74
      %s94 = sphi 0, %s96
      %s97 = sphi 0, %s94
      %s98 = sphi 0, %s97
      %s114 = sphi 0, %s98
    $region4: #{tpu_custom_call.1} parent=1 // loop_header_branch
      %19 = sbr.rel (%p17) target = $region8
    $region5: #{tpu_custom_call.1} parent=1 // loop_body
      %s21 = ssub.s32 %s16, 1
      %s22 = ssub.s32 %s16, 2
      %s23 = sadd.s32 %s16, 1
      %s24 = ssub.s32 %s16, %s23
      %p25 = scmp.eq.s32.totalorder %s24, 0
      %s27 = sadd.s32 %s26, 1
      %s28 = scalar_select %p25, %s26, %s27
      %p31 = pneg %p25
      %p32 = scmp.eq.s32.totalorder %s16, 1
      %p33 = por %p31, %p32
      %p34 = scmp.ne.s32.totalorder %s26, %s29
      %p35 = scmp.eq.s32.totalorder %s16, 0
      %p36 = por %p34, %p35
      %p37 = scmp.ne.s32.totalorder %s26, %s29
      %p38 = scmp.eq.s32.totalorder %s21, 1
      %p39 = por %p37, %p38
      %p40 = scmp.ne.s32.totalorder %s29, %s30
      %p41 = scmp.eq.s32.totalorder %s21, 0
      %p42 = por %p40, %p41
      %p43 = scmp.ne.s32.totalorder %s29, %s30
      %p44 = scmp.eq.s32.totalorder %s22, 1
      %p45 = por %p43, %p44
      %p47 = scmp.ne.s32.totalorder %s30, %s46
      %p48 = scmp.eq.s32.totalorder %s22, 0
      %p49 = por %p47, %p48
      %s51 = sadd.s32 %s50, 1
      %p54 = scmp.eq.s32.totalorder %s16, 1
      %p55 = scmp.ne.s32.totalorder %s50, %s52
      %p56 = scmp.eq.s32.totalorder %s16, 0
      %p57 = por %p55, %p56
      %p58 = scmp.ne.s32.totalorder %s50, %s52
      %p59 = scmp.eq.s32.totalorder %s21, 1
      %p60 = por %p58, %p59
      %p61 = scmp.ne.s32.totalorder %s52, %s53
      %p62 = scmp.eq.s32.totalorder %s21, 0
      %p63 = por %p61, %p62
      %p64 = scmp.ne.s32.totalorder %s52, %s53
      %p65 = scmp.eq.s32.totalorder %s22, 1
      %p66 = por %p64, %p65
      %p68 = scmp.ne.s32.totalorder %s53, %s67
      %p69 = scmp.eq.s32.totalorder %s22, 0
      %p70 = por %p68, %p69
      %s72 = sadd.s32 %s71, 1
      %p75 = scmp.eq.s32.totalorder %s16, 1
      %p76 = scmp.ne.s32.totalorder %s71, %s73
      %p77 = scmp.eq.s32.totalorder %s16, 0
      %p78 = por %p76, %p77
      %p79 = scmp.ne.s32.totalorder %s71, %s73
      %p80 = scmp.eq.s32.totalorder %s21, 1
      %p81 = por %p79, %p80
      %p82 = scmp.ne.s32.totalorder %s73, %s74
      %p83 = scmp.eq.s32.totalorder %s21, 0
      %p84 = por %p82, %p83
      %p85 = scmp.ne.s32.totalorder %s73, %s74
      %p86 = scmp.eq.s32.totalorder %s22, 1
      %p87 = por %p85, %p86
      %p89 = scmp.ne.s32.totalorder %s74, %s88
      %p90 = scmp.eq.s32.totalorder %s22, 0
      %p91 = por %p89, %p90
      %s92 = ssub.s32 %s16, %s23
      %p93 = scmp.eq.s32.totalorder %s92, 0
      %s95 = sadd.s32 %s94, 1
      %s96 = scalar_select %p93, %s94, %s95
      %p99 = pneg %p93
      %p100 = scmp.eq.s32.totalorder %s16, 1
      %p101 = por %p99, %p100
      %p102 = scmp.ne.s32.totalorder %s94, %s97
      %p103 = scmp.eq.s32.totalorder %s16, 0
      %p104 = por %p102, %p103
      %p105 = scmp.ne.s32.totalorder %s94, %s97
      %p106 = scmp.eq.s32.totalorder %s21, 1
      %p107 = por %p105, %p106
      %p108 = scmp.ne.s32.totalorder %s97, %s98
      %p109 = scmp.eq.s32.totalorder %s21, 0
      %p110 = por %p108, %p109
      %p111 = scmp.ne.s32.totalorder %s97, %s98
      %p112 = scmp.eq.s32.totalorder %s22, 1
      %p113 = por %p111, %p112
      %p115 = scmp.ne.s32.totalorder %s98, %s114
      %p116 = scmp.eq.s32.totalorder %s22, 0
      %p117 = por %p115, %p116
      %p118 = scmp.le.s32.totalorder 1, %s16
      %p119 = scmp.lt.s32.totalorder %s16, 3
      %p120 = pnand %p118, %p119
      %p121 = pneg %p120
      // Predicated region
      $region9: #{tpu_custom_call.1} parent=5 // pred_check
        _
      $region10: #{tpu_custom_call.1} parent=5 // pred_check_branch
        %123 = sbr.rel (%p120) target = $region12
      $region11: #{tpu_custom_call.1} parent=5 // pred_region
        %s124 = ssub.s32 %s16, 1
        // Predicated region
        $region13: #{tpu_custom_call.1} parent=11 // pred_check
          %p125 = pneg %p63
        $region14: #{tpu_custom_call.1} parent=11 // pred_check_branch
          %127 = sbr.rel (%p125) target = $region16
        $region15: #{tpu_custom_call.1} parent=11 // pred_region
          %s129 = ssub.s32 2048, 2048
          %130 = vsyncadd [#allocation6], %s129
          %s131 = sshll.u32 [#allocation5], 4
          %s132 = int_to_ptr.vmem [resolvable:$true] %s131
          %137 = dma.hbm_to_vmem [thread:$0]  %s1, 2048, %s132, [#allocation6], 128, 128, 8
        $region16: #{tpu_custom_call.1} parent=11 // pred_fallthru
          _
        // Predicated region
        $region17: #{tpu_custom_call.1} parent=11 // pred_check
          %p138 = pneg %p84
        $region18: #{tpu_custom_call.1} parent=11 // pred_check_branch
          %140 = sbr.rel (%p138) target = $region20
        $region19: #{tpu_custom_call.1} parent=11 // pred_region
          _
        $region20: #{tpu_custom_call.1} parent=11 // pred_fallthru
          _
      $region12: #{tpu_custom_call.1} parent=5 // pred_fallthru
        _
      %p141 = scmp.lt.s32.totalorder %s16, 2
      // Predicated region
      $region21: #{tpu_custom_call.1} parent=5 // pred_check
        %p142 = pneg %p141
      $region22: #{tpu_custom_call.1} parent=5 // pred_check_branch
        %144 = sbr.rel (%p142) target = $region24
      $region23: #{tpu_custom_call.1} parent=5 // pred_region
        // Predicated region
        $region25: #{tpu_custom_call.1} parent=23 // pred_check
          %p145 = pneg %p36
        $region26: #{tpu_custom_call.1} parent=23 // pred_check_branch
          %147 = sbr.rel (%p145) target = $region28
        $region27: #{tpu_custom_call.1} parent=23 // pred_region
          %s148 = sand.u32 %s26, 1
          %s149 = scalar_lea.sflag [#allocation3], %s148
          %s150 = sand.u32 %s26, 1
          %s151 = smul.addr %s150, 8
          %s152 = scalar_lea.vmem [#allocation2], %s151
          %s154 = ssub.s32 128, 128
          %155 = vsyncadd %s149, %s154
          %s156 = smul.addr %s16, 128
          %s157 = scalar_lea.hbm %s0, %s156
          %s159 = sshll.u32 %s152, 4
          %s160 = int_to_ptr.vmem [resolvable:$true] %s159
          %162 = dma.hbm_to_vmem [thread:$0]  %s157, 128, %s160, %s149
        $region28: #{tpu_custom_call.1} parent=23 // pred_fallthru
          _
      $region24: #{tpu_custom_call.1} parent=5 // pred_fallthru
        _
      %p163 = scmp.le.s32.totalorder 1, %s16
      %p164 = scmp.lt.s32.totalorder %s16, 3
      %p165 = pnand %p163, %p164
      %p166 = pneg %p165
      // Predicated region
      $region29: #{tpu_custom_call.1} parent=5 // pred_check
        _
      $region30: #{tpu_custom_call.1} parent=5 // pred_check_branch
        %168 = sbr.rel (%p165) target = $region32
      $region31: #{tpu_custom_call.1} parent=5 // pred_region
        %s169 = ssub.s32 %s16, 1
        %s170 = sand.u32 %s29, 1
        %s171 = scalar_lea.sflag [#allocation3], %s170
        %s172 = sand.u32 %s29, 1
        %s173 = smul.addr %s172, 8
        %s174 = scalar_lea.vmem [#allocation2], %s173
        // Predicated region
        $region33: #{tpu_custom_call.1} parent=31 // pred_check
          %p175 = pneg %p42
        $region34: #{tpu_custom_call.1} parent=31 // pred_check_branch
          %177 = sbr.rel (%p175) target = $region36
        $region35: #{tpu_custom_call.1} parent=31 // pred_region
          %178 = dma.done %s171, 128
        $region36: #{tpu_custom_call.1} parent=31 // pred_fallthru
          _
        // Predicated region
        $region37: #{tpu_custom_call.1} parent=31 // pred_check
          %p179 = pneg %p63
        $region38: #{tpu_custom_call.1} parent=31 // pred_check_branch
          %181 = sbr.rel (%p179) target = $region40
        $region39: #{tpu_custom_call.1} parent=31 // pred_region
          %182 = dma.done [#allocation6], 2048
        $region40: #{tpu_custom_call.1} parent=31 // pred_fallthru
          _
        %s183 = sand.u32 %s29, 1
        %s184 = scalar_lea.sflag [#allocation3], %s183
        %s185 = sand.u32 %s29, 1
        %s186 = smul.addr %s185, 8
        %s187 = scalar_lea.vmem [#allocation2], %s186
        %p188 = pneg %p42
        %p189 = pneg %p39
        %p190 = pneg %p63
        %p191 = pneg %p60
        %p192 = pneg %p84
        %p193 = pneg %p81
        %p194 = pneg %p110
        %p195 = pneg %p107
        %s196 = sand.u32 %s97, 1
        %s197 = scalar_lea.sflag [#allocation4], %s196
        %s198 = sand.u32 %s97, 1
        %s199 = smul.addr %s198, 8
        %s200 = scalar_lea.vmem [#allocation7], %s199
        %v201 = vld [vmem:[%s174] sm:$0xff]
        %v202 = vld [vmem:[#allocation5] sm:$0xff]
        %v203 = vld [vmem:[#allocation5 + $0x8] sm:$0xff]
        %v204 = vld [vmem:[#allocation5 + $0x10] sm:$0xff]
        %v205 = vld [vmem:[#allocation5 + $0x18] sm:$0xff]
        %v206 = vld [vmem:[#allocation5 + $0x20] sm:$0xff]
        %v207 = vld [vmem:[#allocation5 + $0x28] sm:$0xff]
        %v208 = vld [vmem:[#allocation5 + $0x30] sm:$0xff]
        %v209 = vld [vmem:[#allocation5 + $0x38] sm:$0xff]
        %v210 = vld [vmem:[#allocation5 + $0x40] sm:$0xff]
        %v211 = vld [vmem:[#allocation5 + $0x48] sm:$0xff]
        %v212 = vld [vmem:[#allocation5 + $0x50] sm:$0xff]
        %v213 = vld [vmem:[#allocation5 + $0x58] sm:$0xff]
        %v214 = vld [vmem:[#allocation5 + $0x60] sm:$0xff]
        %v215 = vld [vmem:[#allocation5 + $0x68] sm:$0xff]
        %v216 = vld [vmem:[#allocation5 + $0x70] sm:$0xff]
        %v217 = vld [vmem:[#allocation5 + $0x78] sm:$0xff]
        %v218 = vld [vmem:[%s2] sm:$0x7]
        %219 = vadd.xlane.f32.xlu0 %v201
        %v220 = vpop.xlane.xlu0 %219
        %v221 = vmul.f32 %v220, 0.0078125
        %v222 = vsub.f32 %v201, %v221
        %v223 = vmul.f32 %v222, %v222
        %224 = vadd.xlane.f32.xlu0 %v223
        %v225 = vpop.xlane.xlu0 %224
        %v226 = vmul.f32 %v225, 0.007874016
        %v227 = vrsqrt.pop %v226
        %v228 = vmul.f32 %v226, %v227
        %vm229 = vcmp.eq.f32.partialorder %v226, inf
        %v230 = vsel %vm229, %v226, %v228
        %vm231 = vcmp.eq.f32.partialorder %v226, 0.0
        %v232 = vand.u32 %v226, 2147483648
        %v233 = vsel %vm231, %v232, %v230
        %v234 = vadd.f32 %v233, 1e-06
        %v235 = vrcp.pop %v234
        %v236 = vmul.f32 1.0, %v235
        %v237 = vlaneseq
        %v238 = vshrl.u32 %v237, 7
        %v239 = vsub.s32 1, %v238
        %v240 = vrot.slane %v218, %v239
        %v241 = vmul.f32 %v240, %v222
        %v242 = vmul.f32 %v241, %v236
        %v243 = vlaneseq
        %v244 = vshrl.u32 %v243, 7
        %v245 = vsub.s32 2, %v244
        %v246 = vrot.slane %v218, %v245
        %v247 = vadd.f32 %v242, %v246
        %v248 = vlaneseq
        %v249 = vshrl.u32 %v248, 7
        %v250 = vsub.s32 0, %v249
        %v251 = vrot.slane %v218, %v250
        %252 = vmatprep.subr.mxu0 0.0
        %253 = vmatpush1.msra.mxu0 %v202
        %254 = vmatprep.subr.mxu0 0.0
        %255 = vmatpush1.msra.mxu0 %v203
        %256 = vmatprep.subr.mxu0 0.0
        %257 = vmatpush1.msra.mxu0 %v204
        %258 = vmatprep.subr.mxu0 0.0
        %259 = vmatpush1.msra.mxu0 %v205
        %260 = vmatprep.subr.mxu0 0.0
        %261 = vmatpush1.msra.mxu0 %v206
        %262 = vmatprep.subr.mxu0 0.0
        %263 = vmatpush1.msra.mxu0 %v207
        %264 = vmatprep.subr.mxu0 0.0
        %265 = vmatpush1.msra.mxu0 %v208
        %266 = vmatprep.subr.mxu0 0.0
        %267 = vmatpush1.msra.mxu0 %v209
        %268 = vmatprep.subr.mxu0 0.0
        %269 = vmatpush1.msra.mxu0 %v210
        %270 = vmatprep.subr.mxu0 0.0
        %271 = vmatpush1.msra.mxu0 %v211
        %272 = vmatprep.subr.mxu0 0.0
        %273 = vmatpush1.msra.mxu0 %v212
        %274 = vmatprep.subr.mxu0 0.0
        %275 = vmatpush1.msra.mxu0 %v213
        %276 = vmatprep.subr.mxu0 0.0
        %277 = vmatpush1.msra.mxu0 %v214
        %278 = vmatprep.subr.mxu0 0.0
        %279 = vmatpush1.msra.mxu0 %v215
        %280 = vmatprep.subr.mxu0 0.0
        %281 = vmatpush1.msra.mxu0 %v216
        %282 = vmatprep.subr.mxu0 0.0
        %283 = vmatpush1.msra.mxu0 %v217
        %284 = vmatprep.subr.mxu0 0.0
        %285 = vmatpush1.msra.mxu0 0.0
        %286 = vmatprep.subr.mxu0 0.0
        %287 = vmatpush1.msra.mxu0 0.0
        %288 = vmatprep.subr.mxu0 0.0
        %289 = vmatpush1.msra.mxu0 0.0
        %290 = vmatprep.subr.mxu0 0.0
        %291 = vmatpush1.msra.mxu0 0.0
        %292 = vmatprep.subr.mxu0 0.0
        %293 = vmatpush1.msra.mxu0 0.0
        %294 = vmatprep.subr.mxu0 0.0
        %295 = vmatpush1.msra.mxu0 0.0
        %296 = vmatprep.subr.mxu0 0.0
        %297 = vmatpush1.msra.mxu0 0.0
        %298 = vmatprep.subr.mxu0 0.0
        %299 = vmatpush1.msra.mxu0 0.0
        %300 = vmatprep.subr.mxu0 0.0
        %301 = vmatpush1.msra.mxu0 0.0
        %302 = vmatprep.subr.mxu0 0.0
        %303 = vmatpush1.msra.mxu0 0.0
        %304 = vmatprep.subr.mxu0 0.0
        %305 = vmatpush1.msra.mxu0 0.0
        %306 = vmatprep.subr.mxu0 0.0
        %307 = vmatpush1.msra.mxu0 0.0
        %308 = vmatprep.subr.mxu0 0.0
        %309 = vmatpush1.msra.mxu0 0.0
        %310 = vmatprep.subr.mxu0 0.0
        %311 = vmatpush1.msra.mxu0 0.0
        %312 = vmatprep.subr.mxu0 0.0
        %313 = vmatpush1.msra.mxu0 0.0
        %314 = vmatprep.subr.mxu0 0.0
        %315 = vmatpush1.msra.mxu0 0.0
        %316 = vmatprep.mubr.f32.mxu0 0.0
        %317 = vmatmul.mubr.f32.gmra.mrb[0].mxu0 %v247
        %v318 = vpop.f32.mrb[0].mxu0
        %v319 = vadd.f32 %v251, %v318
        %v320 = vpop.f32.mrb[0].mxu0
        %321 = vdwg.mxu0
        %v322 = vadd.f32 %v201, %v319
        %323 = vst [vmem:[%s200] sm:$0xff] %v322
        %s324 = sand.u32 %s97, 1
        %s325 = scalar_lea.sflag [#allocation4], %s324
        %s326 = sand.u32 %s97, 1
        %s327 = smul.addr %s326, 8
        %s328 = scalar_lea.vmem [#allocation7], %s327
        // Predicated region
        $region41: #{tpu_custom_call.1} parent=31 // pred_check
          %p329 = pneg %p107
        $region42: #{tpu_custom_call.1} parent=31 // pred_check_branch
          %331 = sbr.rel (%p329) target = $region44
        $region43: #{tpu_custom_call.1} parent=31 // pred_region
          %s333 = ssub.s32 128, 128
          %334 = vsyncadd %s325, %s333
          %s335 = smul.addr %s21, 128
          %s336 = scalar_lea.hbm %s3, %s335
          %s338 = sshll.u32 %s328, 4
          %s339 = int_to_ptr.vmem [resolvable:$true] %s338
          %341 = dma.vmem_to_hbm [thread:$0]  %s339, 128, %s336, %s325
        $region44: #{tpu_custom_call.1} parent=31 // pred_fallthru
          _
      $region32: #{tpu_custom_call.1} parent=5 // pred_fallthru
        _
      %p342 = scmp.le.s32.totalorder 2, %s16
      // Predicated region
      $region45: #{tpu_custom_call.1} parent=5 // pred_check
        %p343 = pneg %p342
      $region46: #{tpu_custom_call.1} parent=5 // pred_check_branch
        %345 = sbr.rel (%p343) target = $region48
      $region47: #{tpu_custom_call.1} parent=5 // pred_region
        %s346 = ssub.s32 %s16, 2
        // Predicated region
        $region49: #{tpu_custom_call.1} parent=47 // pred_check
          %p347 = pneg %p113
        $region50: #{tpu_custom_call.1} parent=47 // pred_check_branch
          %349 = sbr.rel (%p347) target = $region52
        $region51: #{tpu_custom_call.1} parent=47 // pred_region
          %s350 = sand.u32 %s98, 1
          %s351 = scalar_lea.sflag [#allocation4], %s350
          %s352 = sand.u32 %s98, 1
          %s353 = smul.addr %s352, 8
          %s354 = scalar_lea.vmem [#allocation7], %s353
          %355 = dma.done %s351, 128
        $region52: #{tpu_custom_call.1} parent=47 // pred_fallthru
          _
      $region48: #{tpu_custom_call.1} parent=5 // pred_fallthru
        _
    $region6: #{tpu_custom_call.1} parent=1 // loop_footer
      %s20 = sadd.s32 1, %s16
    $region7: #{tpu_custom_call.1} parent=1 // loop_footer_branch
      %15 = sbr.rel target = $region3
    $region8: #{tpu_custom_call.1} parent=1 // loop_exit
      _
    %356 = vsyncpa [#allocation3], 1
    %s357 = scalar_lea.sflag [#allocation3], 1
    %358 = vsyncpa %s357, 1
    %359 = vsyncpa [#allocation6], 1
    %360 = vsyncpa [#allocation4], 1
    %s361 = scalar_lea.sflag [#allocation4], 1
    %362 = vsyncpa %s361, 1

</llo_original>
